<compile_context>
chip_gen: v7x
topology: tpu7x:2x2x1
jax: 0.10.0
libtpu: 0.0.40
codegen_flags: <defaults>
</compile_context>

<pallas_src>
import jax
import jax.numpy as jnp
from jax.experimental import pallas as pl
from jax.experimental.pallas import tpu as pltpu


def _round_up(x, m):
    return ((x + m - 1) // m) * m


def _sepconv_kernel(x_ref, xh_ref, w_ref, o_ref, xw_ref, acc_ref):
    # x_ref  : (1, TL, C_in_p)       current sequence tile (already zero padded)
    # xh_ref : (1, TH, C_in_p)       halo = first TH rows of the next tile
    # w_ref  : (K, C_in_p, C_out_p)  fused depthwise*pointwise weights (resident)
    # o_ref  : (1, TL, C_out_p)
    # xw_ref : (TL + TH, C_in_p)     VMEM scratch: tile + halo stitched together
    # acc_ref: (TL, C_out_p) f32     VMEM accumulator
    K = w_ref.shape[0]
    TL = x_ref.shape[1]
    TH = xh_ref.shape[1]

    # Stitch tile + halo into one contiguous window (aligned sublane stores).
    xw_ref[0:TL, :] = x_ref[0]
    xw_ref[TL:TL + TH, :] = xh_ref[0]

    def tap(k):
        # shift_k(x) @ W_k : all FLOPs on the MXU, f32 accumulation.
        return jnp.dot(xw_ref[k:k + TL, :], w_ref[k],
                       preferred_element_type=jnp.float32)

    if K == 1:
        o_ref[0] = tap(0).astype(o_ref.dtype)
    else:
        acc_ref[...] = tap(0)
        for k in range(1, K - 1):
            acc_ref[...] += tap(k)
        # Fuse the last tap into the output store (saves one acc store + load).
        o_ref[0] = (acc_ref[...] + tap(K - 1)).astype(o_ref.dtype)


def separable_conv1d(x, w_dw, w_pw, *, stride=1, padding=None, tile_l=256):
    """x: (B, L, C_in) -> (B, L_out, C_out). w_dw: (K, C_in), w_pw: (C_in, C_out)."""
    B, L, C_in = x.shape
    K = w_dw.shape[0]
    C_out = w_pw.shape[1]
    if stride != 1:
        # TODO(synk): stride > 1 (strided sublane access) not implemented.
        raise NotImplementedError("Pallas SeparableConv1d supports stride=1 only")
    if padding is None:
        padding = (K - 1) // 2
    L_out = L + 2 * padding - K + 1

    # Lane-dense channel padding: multiples of 128 for unmasked vst + full MXU fill.
    C_in_p = _round_up(C_in, 128)
    C_out_p = _round_up(C_out, 128)

    # Sequence tiling. TH (halo rows) and TL (tile rows) are multiples of 16 so the
    # same block shapes are legal for f32 and bf16.  Per-step double-buffered VMEM
    # ~ 2*((TL+TH)*C_in_p + TL*C_out_p)*itemsize + weights + f32 acc; the default
    # tile_l=256 stays far below the 32 MiB scoped budget (v7x) for C up to ~4k.
    SUB = 16
    TH = max(SUB, _round_up(K - 1, SUB))
    TL = max(TH, min(_round_up(tile_l, TH), _round_up(L_out, TH)))
    nLt = pl.cdiv(L_out, TL)
    L_grid = nLt * TL                 # padded output length (grid-aligned)
    L_pad_total = L_grid + TH         # + TH zero rows so the last halo is in bounds

    # Single fused pad: conv halo + tile alignment along L, lane alignment along C.
    x_pad = jnp.pad(
        x, ((0, 0), (padding, L_pad_total - L - padding), (0, C_in_p - C_in)))

    # Fused depthwise (x) pointwise weights: W[k] = diag(w_dw[k]) @ w_pw.
    w_f = (w_dw.astype(jnp.float32)[:, :, None]
           * w_pw.astype(jnp.float32)[None, :, :])
    w_f = jnp.pad(w_f, ((0, 0), (0, C_in_p - C_in), (0, C_out_p - C_out)))
    w_f = w_f.astype(x.dtype)

    halo_step = TL // TH
    out = pl.pallas_call(
        _sepconv_kernel,
        out_shape=jax.ShapeDtypeStruct((B, L_grid, C_out_p), x.dtype),
        grid_spec=pltpu.PrefetchScalarGridSpec(
            num_scalar_prefetch=0,
            grid=(B, nLt),
            in_specs=[
                # main sequence tile
                pl.BlockSpec((1, TL, C_in_p), lambda b, l: (b, l, 0)),
                # K-1 row halo = head of the next tile (same padded array)
                pl.BlockSpec((1, TH, C_in_p),
                             lambda b, l: (b, (l + 1) * halo_step, 0)),
                # fused weights: constant index map -> stays resident in VMEM
                pl.BlockSpec((K, C_in_p, C_out_p), lambda b, l: (0, 0, 0)),
            ],
            out_specs=pl.BlockSpec((1, TL, C_out_p), lambda b, l: (b, l, 0)),
            scratch_shapes=[
                pltpu.VMEM((TL + TH, C_in_p), x.dtype),
                pltpu.VMEM((TL, C_out_p), jnp.float32),
            ],
        ),
        compiler_params=pltpu.CompilerParams(
            dimension_semantics=("parallel", "parallel"),
            vmem_limit_bytes=32 * 1024 * 1024),
    )(x_pad, x_pad, w_f)

    if L_grid != L_out or C_out_p != C_out:
        out = out[:, :L_out, :C_out]
    return out


def _reference(x, w_dw, w_pw, stride, padding):
    # Pure-JAX reference matching PyTorch Conv1d (cross-correlation, zero padding).
    K = w_dw.shape[0]
    L = x.shape[1]
    L_out = (L + 2 * padding - K) // stride + 1
    xp = jnp.pad(x, ((0, 0), (padding, padding), (0, 0)))
    dw = sum(
        xp[:, k:k + stride * (L_out - 1) + 1:stride, :] * w_dw[k][None, None, :]
        for k in range(K)
    )
    return jnp.einsum('blc,cd->bld', dw, w_pw)


if __name__ == "__main__":
    B, L, C_in, C_out, K = 2, 16, 32, 32, 3
    stride = 1
    padding = (K - 1) // 2

    key = jax.random.PRNGKey(0)
    kx, kdw, kpw = jax.random.split(key, 3)
    x = jax.random.normal(kx, (B, L, C_in), dtype=jnp.float32)
    # depthwise weight (K, C_in)   <-> torch depthwise.weight (C_in, 1, K) transposed
    w_dw = 0.1 * jax.random.normal(kdw, (K, C_in), dtype=jnp.float32)
    # pointwise weight (C_in, C_out) <-> torch pointwise.weight (C_out, C_in, 1) transposed
    w_pw = 0.1 * jax.random.normal(kpw, (C_in, C_out), dtype=jnp.float32)

    ref = _reference(x, w_dw, w_pw, stride, padding)

    # f32 path
    out = separable_conv1d(x, w_dw, w_pw, stride=stride, padding=padding)
    out = jax.block_until_ready(out)
    assert out.shape == (B, L, C_out), out.shape
    assert jnp.allclose(out, ref, atol=2e-3, rtol=2e-3), "f32 mismatch vs reference"

    # bf16 path (native MXU input dtype; accumulation stays f32 inside the kernel)
    out_bf16 = separable_conv1d(
        x.astype(jnp.bfloat16), w_dw.astype(jnp.bfloat16),
        w_pw.astype(jnp.bfloat16), stride=stride, padding=padding)
    out_bf16 = jax.block_until_ready(out_bf16)
    assert out_bf16.shape == (B, L, C_out), out_bf16.shape
    assert jnp.allclose(out_bf16.astype(jnp.float32), ref, atol=5e-2, rtol=5e-2), \
        "bf16 mismatch vs reference"

    print("KERNEL_OK")
</pallas_src>

<mosaic_0001>
module attributes {stable_mosaic.version = 11 : i64} {
  func.func @_sepconv_kernel(%arg0: i32, %arg1: i32, %arg2: memref<1x16x128xf32, #tpu.memory_space<vmem>>, %arg3: memref<1x16x128xf32, #tpu.memory_space<vmem>>, %arg4: memref<3x128x128xf32, #tpu.memory_space<vmem>>, %arg5: memref<1x16x128xf32, #tpu.memory_space<vmem>>, %arg6: memref<32x128xf32, #tpu.memory_space<vmem>>, %arg7: memref<16x128xf32, #tpu.memory_space<vmem>>) attributes {dimension_semantics = [#tpu.dimension_semantics<parallel>, #tpu.dimension_semantics<parallel>], iteration_bounds = array<i64: 2, 1>, scalar_prefetch = 0 : i64, scratch_operands = 2 : i64, tpu.core_type = #tpu.core_type<tc>, window_params = [{transform_indices = @transform_0, window_bounds = array<i64: 1, 16, 128>}, {transform_indices = @transform_1, window_bounds = array<i64: 1, 16, 128>}, {pipeline_mode = #tpu.pipeline_mode<synchronous>, transform_indices = @transform_2, window_bounds = array<i64: 3, 128, 128>}, {transform_indices = @transform_3, window_bounds = array<i64: 1, 16, 128>}]} {
    %c0 = arith.constant 0 : index
    %c0_0 = arith.constant 0 : index
    %c0_1 = arith.constant 0 : index
    %0 = vector.load %arg2[%c0, %c0_0, %c0_1] : memref<1x16x128xf32, #tpu.memory_space<vmem>>, vector<1x16x128xf32>
    %1 = vector.shape_cast %0 : vector<1x16x128xf32> to vector<16x128xf32>
    %c0_2 = arith.constant 0 : index
    %c0_3 = arith.constant 0 : index
    %2 = vector.load %arg6[%c0_2, %c0_3] : memref<32x128xf32, #tpu.memory_space<vmem>>, vector<16x128xf32>
    tpu.vector_store %arg6[%c0_2, %c0_3], %1 {strides = array<i32>} : memref<32x128xf32, #tpu.memory_space<vmem>>, vector<16x128xf32>,
    %c0_4 = arith.constant 0 : index
    %c0_5 = arith.constant 0 : index
    %c0_6 = arith.constant 0 : index
    %3 = vector.load %arg3[%c0_4, %c0_5, %c0_6] : memref<1x16x128xf32, #tpu.memory_space<vmem>>, vector<1x16x128xf32>
    %4 = vector.shape_cast %3 : vector<1x16x128xf32> to vector<16x128xf32>
    %c16 = arith.constant 16 : index
    %c0_7 = arith.constant 0 : index
    %5 = vector.load %arg6[%c16, %c0_7] : memref<32x128xf32, #tpu.memory_space<vmem>>, vector<16x128xf32>
    tpu.vector_store %arg6[%c16, %c0_7], %4 {strides = array<i32>} : memref<32x128xf32, #tpu.memory_space<vmem>>, vector<16x128xf32>,
    %c0_8 = arith.constant 0 : index
    %c0_9 = arith.constant 0 : index
    %6 = vector.load %arg6[%c0_8, %c0_9] : memref<32x128xf32, #tpu.memory_space<vmem>>, vector<16x128xf32>
    %c0_10 = arith.constant 0 : index
    %c0_11 = arith.constant 0 : index
    %c0_12 = arith.constant 0 : index
    %7 = vector.load %arg4[%c0_10, %c0_11, %c0_12] : memref<3x128x128xf32, #tpu.memory_space<vmem>>, vector<1x128x128xf32>
    %8 = vector.shape_cast %7 : vector<1x128x128xf32> to vector<128x128xf32>
    %cst = arith.constant dense<0.000000e+00> : vector<16x128xf32>
    %9 = tpu.matmul %6, %8, %cst {dimension_numbers = #tpu.dot_dimension_numbers<[1], [0], [0], [1], [0, 0, 1, 1], [], []>} : vector<16x128xf32>, vector<128x128xf32>, vector<16x128xf32> -> vector<16x128xf32>
    %c0_13 = arith.constant 0 : index
    %c0_14 = arith.constant 0 : index
    %10 = vector.load %arg7[%c0_13, %c0_14] : memref<16x128xf32, #tpu.memory_space<vmem>>, vector<16x128xf32>
    tpu.vector_store %arg7[%c0_13, %c0_14], %9 {strides = array<i32>} : memref<16x128xf32, #tpu.memory_space<vmem>>, vector<16x128xf32>,
    %c0_15 = arith.constant 0 : index
    %c0_16 = arith.constant 0 : index
    %11 = vector.load %arg7[%c0_15, %c0_16] : memref<16x128xf32, #tpu.memory_space<vmem>>, vector<16x128xf32>
    %c1 = arith.constant 1 : index
    %c0_17 = arith.constant 0 : index
    %12 = vector.load %arg6[%c1, %c0_17] : memref<32x128xf32, #tpu.memory_space<vmem>>, vector<16x128xf32>
    %c1_18 = arith.constant 1 : index
    %c0_19 = arith.constant 0 : index
    %c0_20 = arith.constant 0 : index
    %13 = vector.load %arg4[%c1_18, %c0_19, %c0_20] : memref<3x128x128xf32, #tpu.memory_space<vmem>>, vector<1x128x128xf32>
    %14 = vector.shape_cast %13 : vector<1x128x128xf32> to vector<128x128xf32>
    %cst_21 = arith.constant dense<0.000000e+00> : vector<16x128xf32>
    %15 = tpu.matmul %12, %14, %cst_21 {dimension_numbers = #tpu.dot_dimension_numbers<[1], [0], [0], [1], [0, 0, 1, 1], [], []>} : vector<16x128xf32>, vector<128x128xf32>, vector<16x128xf32> -> vector<16x128xf32>
    %16 = arith.addf %11, %15 : vector<16x128xf32>
    %c0_22 = arith.constant 0 : index
    %c0_23 = arith.constant 0 : index
    %17 = vector.load %arg7[%c0_22, %c0_23] : memref<16x128xf32, #tpu.memory_space<vmem>>, vector<16x128xf32>
    tpu.vector_store %arg7[%c0_22, %c0_23], %16 {strides = array<i32>} : memref<16x128xf32, #tpu.memory_space<vmem>>, vector<16x128xf32>,
    %c0_24 = arith.constant 0 : index
    %c0_25 = arith.constant 0 : index
    %18 = vector.load %arg7[%c0_24, %c0_25] : memref<16x128xf32, #tpu.memory_space<vmem>>, vector<16x128xf32>
    %c2 = arith.constant 2 : index
    %c0_26 = arith.constant 0 : index
    %19 = vector.load %arg6[%c2, %c0_26] : memref<32x128xf32, #tpu.memory_space<vmem>>, vector<16x128xf32>
    %c2_27 = arith.constant 2 : index
    %c0_28 = arith.constant 0 : index
    %c0_29 = arith.constant 0 : index
    %20 = vector.load %arg4[%c2_27, %c0_28, %c0_29] : memref<3x128x128xf32, #tpu.memory_space<vmem>>, vector<1x128x128xf32>
    %21 = vector.shape_cast %20 : vector<1x128x128xf32> to vector<128x128xf32>
    %cst_30 = arith.constant dense<0.000000e+00> : vector<16x128xf32>
    %22 = tpu.matmul %19, %21, %cst_30 {dimension_numbers = #tpu.dot_dimension_numbers<[1], [0], [0], [1], [0, 0, 1, 1], [], []>} : vector<16x128xf32>, vector<128x128xf32>, vector<16x128xf32> -> vector<16x128xf32>
    %23 = arith.addf %18, %22 : vector<16x128xf32>
    %c0_31 = arith.constant 0 : index
    %c0_32 = arith.constant 0 : index
    %c0_33 = arith.constant 0 : index
    %24 = vector.load %arg5[%c0_31, %c0_32, %c0_33] : memref<1x16x128xf32, #tpu.memory_space<vmem>>, vector<1x16x128xf32>
    %25 = vector.shape_cast %24 : vector<1x16x128xf32> to vector<16x128xf32>
    %26 = vector.shape_cast %23 : vector<16x128xf32> to vector<1x16x128xf32>
    tpu.vector_store %arg5[%c0_31, %c0_32, %c0_33], %26 {strides = array<i32>} : memref<1x16x128xf32, #tpu.memory_space<vmem>>, vector<1x16x128xf32>,
    return
  }
  func.func @transform_0(%arg0: i32, %arg1: i32) -> (i32, i32, i32) {
    %c0_i32 = arith.constant 0 : i32
    %c0_i32_0 = arith.constant 0 : i32
    return %arg0, %arg1, %c0_i32 : i32, i32, i32
  }
  func.func @transform_1(%arg0: i32, %arg1: i32) -> (i32, i32, i32) {
    %c1_i32 = arith.constant 1 : i32
    %0 = arith.addi %arg1, %c1_i32 : i32
    %c1_i32_0 = arith.constant 1 : i32
    %1 = arith.muli %0, %c1_i32_0 : i32
    %c0_i32 = arith.constant 0 : i32
    %c0_i32_1 = arith.constant 0 : i32
    return %arg0, %1, %c0_i32 : i32, i32, i32
  }
  func.func @transform_2(%arg0: i32, %arg1: i32) -> (i32, i32, i32) {
    %c0_i32 = arith.constant 0 : i32
    %c0_i32_0 = arith.constant 0 : i32
    %c0_i32_1 = arith.constant 0 : i32
    %c0_i32_2 = arith.constant 0 : i32
    return %c0_i32, %c0_i32_0, %c0_i32_1 : i32, i32, i32
  }
  func.func @transform_3(%arg0: i32, %arg1: i32) -> (i32, i32, i32) {
    %c0_i32 = arith.constant 0 : i32
    %c0_i32_0 = arith.constant 0 : i32
    return %arg0, %arg1, %c0_i32 : i32, i32, i32
  }
}

</mosaic_0001>

<llo_original>
// kernel: tpu_custom_call.1
$region0: #{tpu_custom_call.1}
  #allocation0 [shape = 'u32[]', space=smem, size = 0x4, offset = 0x4, fixed_abs, tag = 'smem constant byte address 0x4 - core index']
  #allocation1 [shape = 'u32[144,128]{1,0:T(1,128)}', space=vmem, size = 0x12000, scoped, tag = 'internal scratch']
  #allocation2 [shape = 'f32[32,128]{1,0:T(8,128)}', space=vmem, size = 0x4000, scoped, tag = 'scratch operand']
  #allocation3 [shape = 'f32[16,128]{1,0:T(8,128)}', space=vmem, size = 0x2000, scoped, tag = 'scratch operand']
  %s0 = inlined_call_operand.hbm [shape: f32[2,32,128], index: 0, kind: input, shape index: {}]
  %s1 = inlined_call_operand.hbm [shape: f32[2,32,128], index: 1, kind: input, shape index: {}]
  %s2 = inlined_call_operand.hbm [shape: f32[3,128,128], index: 2, kind: input, shape index: {}]
  %s3 = inlined_call_operand.hbm [shape: f32[2,16,128], index: 3, kind: output, shape index: {}]
  %s4 = sld [smem:[#allocation0]]
  $region57: #{tpu_custom_call.1} parent=0
    _
  %s6 = ssub.s32 1, %s4
  %s7 = scalar_select 0, %s6, %s4
  $region1: #{tpu_custom_call.1} parent=0
    #allocation4 [shape = 'u8[16384]{0}', space=vmem, size = 0x4000, scoped, tag = 'input window, operand 0']
    #allocation5 [shape = 's32[2]{0}', space=sflag, size = 0x8, scoped, tag = 'scoped memory for tpu_custom_call.1']
    #allocation6 [shape = 's32[2]{0}', space=sflag, size = 0x8, scoped, tag = 'scoped memory for tpu_custom_call.1']
    #allocation7 [shape = 'u8[16384]{0}', space=vmem, size = 0x4000, scoped, tag = 'input window, operand 1']
    #allocation8 [shape = 's32[2]{0}', space=sflag, size = 0x8, scoped, tag = 'scoped memory for tpu_custom_call.1']
    #allocation9 [shape = 'u8[196608]{0}', space=vmem, size = 0x30000, scoped, tag = 'input window, operand 2, single buffered']
    #allocation10 [shape = 'u8[16384]{0}', space=vmem, size = 0x4000, scoped, tag = 'output window, operand 0']
    %8 = vsyncpa [#allocation5], 0
    %s9 = scalar_lea.sflag [#allocation5], 1
    %10 = vsyncpa %s9, 0
    %11 = vsyncpa [#allocation8], 0
    %s12 = scalar_lea.sflag [#allocation8], 1
    %13 = vsyncpa %s12, 0
    %14 = vsyncpa [#allocation6], 0
    %s15 = scalar_lea.sflag [#allocation6], 1
    %16 = vsyncpa %s15, 0
    loop: start=0, step=1, limit=4
    $region2: #{tpu_custom_call.1} parent=1 // loop_pre_header
      _
    $region3: #{tpu_custom_call.1} parent=1 // loop_header
      %s18 = sphi 0, %s22
      %p19 = scmp.ge.s32.totalorder %s18, 4
      %s25 = sphi 0, %s37
      %s26 = sphi 0, %s33
      %s27 = sphi 0, %s25
      %s28 = sphi 0, %s26
      %s29 = sphi 0, %s27
      %s30 = sphi 0, %s28
      %s42 = sphi 0, %s44
      %s45 = sphi 0, %s42
      %s46 = sphi 0, %s45
      %s62 = sphi 0, %s46
      %s72 = sphi 0, %s74
      %s75 = sphi 0, %s72
      %s76 = sphi 0, %s75
      %s92 = sphi 0, %s76
      %s96 = sphi 0, %s96
      %s98 = sphi 0, %s96
      %s99 = sphi 0, %s98
      %s113 = sphi 0, %s99
      %s121 = sphi 0, %s123
      %s124 = sphi 0, %s121
      %s125 = sphi 0, %s124
      %s141 = sphi 0, %s125
    $region4: #{tpu_custom_call.1} parent=1 // loop_header_branch
      %21 = sbr.rel (%p19) target = $region8
    $region5: #{tpu_custom_call.1} parent=1 // loop_body
      %s23 = ssub.s32 %s18, 1
      %s24 = ssub.s32 %s18, 2
      %s31 = sadd.s32 1, %s26
      %p32 = scmp.ge.s32.totalorder %s31, 1
      %s33 = scalar_select %p32, 0, %s31
      %s34 = sadd.s32 1, %s25
      %s35 = scalar_select %p32, %s34, %s25
      %p36 = scmp.ge.s32.totalorder %s35, 2
      %s37 = scalar_select %p36, 0, %s35
      %s38 = ssub.s32 %s25, %s37
      %s39 = ssub.s32 %s26, %s33
      %s40 = sor.u32 %s38, %s39
      %p41 = scmp.eq.s32.totalorder %s40, 0
      %s43 = sadd.s32 %s42, 1
      %s44 = scalar_select %p41, %s42, %s43
      %p47 = pneg %p41
      %p48 = scmp.eq.s32.totalorder %s18, 1
      %p49 = por %p47, %p48
      %p50 = scmp.ne.s32.totalorder %s42, %s45
      %p51 = scmp.eq.s32.totalorder %s18, 0
      %p52 = por %p50, %p51
      %p53 = scmp.ne.s32.totalorder %s42, %s45
      %p54 = scmp.eq.s32.totalorder %s23, 1
      %p55 = por %p53, %p54
      %p56 = scmp.ne.s32.totalorder %s45, %s46
      %p57 = scmp.eq.s32.totalorder %s23, 0
      %p58 = por %p56, %p57
      %p59 = scmp.ne.s32.totalorder %s45, %s46
      %p60 = scmp.eq.s32.totalorder %s24, 1
      %p61 = por %p59, %p60
      %p63 = scmp.ne.s32.totalorder %s46, %s62
      %p64 = scmp.eq.s32.totalorder %s24, 0
      %p65 = por %p63, %p64
      %s66 = sadd.s32 %s26, 1
      %s67 = sadd.s32 %s33, 1
      %s68 = ssub.s32 %s25, %s37
      %s69 = ssub.s32 %s66, %s67
      %s70 = sor.u32 %s68, %s69
      %p71 = scmp.eq.s32.totalorder %s70, 0
      %s73 = sadd.s32 %s72, 1
      %s74 = scalar_select %p71, %s72, %s73
      %p77 = pneg %p71
      %p78 = scmp.eq.s32.totalorder %s18, 1
      %p79 = por %p77, %p78
      %p80 = scmp.ne.s32.totalorder %s72, %s75
      %p81 = scmp.eq.s32.totalorder %s18, 0
      %p82 = por %p80, %p81
      %p83 = scmp.ne.s32.totalorder %s72, %s75
      %p84 = scmp.eq.s32.totalorder %s23, 1
      %p85 = por %p83, %p84
      %p86 = scmp.ne.s32.totalorder %s75, %s76
      %p87 = scmp.eq.s32.totalorder %s23, 0
      %p88 = por %p86, %p87
      %p89 = scmp.ne.s32.totalorder %s75, %s76
      %p90 = scmp.eq.s32.totalorder %s24, 1
      %p91 = por %p89, %p90
      %p93 = scmp.ne.s32.totalorder %s76, %s92
      %p94 = scmp.eq.s32.totalorder %s24, 0
      %p95 = por %p93, %p94
      %s97 = sadd.s32 %s96, 1
      %p100 = scmp.eq.s32.totalorder %s18, 1
      %p101 = scmp.ne.s32.totalorder %s96, %s98
      %p102 = scmp.eq.s32.totalorder %s18, 0
      %p103 = por %p101, %p102
      %p104 = scmp.ne.s32.totalorder %s96, %s98
      %p105 = scmp.eq.s32.totalorder %s23, 1
      %p106 = por %p104, %p105
      %p107 = scmp.ne.s32.totalorder %s98, %s99
      %p108 = scmp.eq.s32.totalorder %s23, 0
      %p109 = por %p107, %p108
      %p110 = scmp.ne.s32.totalorder %s98, %s99
      %p111 = scmp.eq.s32.totalorder %s24, 1
      %p112 = por %p110, %p111
      %p114 = scmp.ne.s32.totalorder %s99, %s113
      %p115 = scmp.eq.s32.totalorder %s24, 0
      %p116 = por %p114, %p115
      %s117 = ssub.s32 %s25, %s37
      %s118 = ssub.s32 %s26, %s33
      %s119 = sor.u32 %s117, %s118
      %p120 = scmp.eq.s32.totalorder %s119, 0
      %s122 = sadd.s32 %s121, 1
      %s123 = scalar_select %p120, %s121, %s122
      %p126 = pneg %p120
      %p127 = scmp.eq.s32.totalorder %s18, 1
      %p128 = por %p126, %p127
      %p129 = scmp.ne.s32.totalorder %s121, %s124
      %p130 = scmp.eq.s32.totalorder %s18, 0
      %p131 = por %p129, %p130
      %p132 = scmp.ne.s32.totalorder %s121, %s124
      %p133 = scmp.eq.s32.totalorder %s23, 1
      %p134 = por %p132, %p133
      %p135 = scmp.ne.s32.totalorder %s124, %s125
      %p136 = scmp.eq.s32.totalorder %s23, 0
      %p137 = por %p135, %p136
      %p138 = scmp.ne.s32.totalorder %s124, %s125
      %p139 = scmp.eq.s32.totalorder %s24, 1
      %p140 = por %p138, %p139
      %p142 = scmp.ne.s32.totalorder %s125, %s141
      %p143 = scmp.eq.s32.totalorder %s24, 0
      %p144 = por %p142, %p143
      %p145 = scmp.le.s32.totalorder 1, %s18
      %p146 = scmp.lt.s32.totalorder %s18, 3
      %p147 = pnand %p145, %p146
      %p148 = pneg %p147
      // Predicated region
      $region9: #{tpu_custom_call.1} parent=5 // pred_check
        _
      $region10: #{tpu_custom_call.1} parent=5 // pred_check_branch
        %150 = sbr.rel (%p147) target = $region12
      $region11: #{tpu_custom_call.1} parent=5 // pred_region
        %s151 = ssub.s32 %s18, 1
        // Predicated region
        $region13: #{tpu_custom_call.1} parent=11 // pred_check
          %p152 = pneg %p109
        $region14: #{tpu_custom_call.1} parent=11 // pred_check_branch
          %154 = sbr.rel (%p152) target = $region16
        $region15: #{tpu_custom_call.1} parent=11 // pred_region
          %s156 = ssub.s32 6144, 6144
          %157 = vsyncadd [#allocation8], %s156
          %s158 = sshll.u32 [#allocation9], 4
          %s159 = int_to_ptr.vmem [resolvable:$true] %s158
          %164 = dma.hbm_to_vmem [thread:$0]  %s2, 6144, %s159, [#allocation8], 128, 128, 8
        $region16: #{tpu_custom_call.1} parent=11 // pred_fallthru
          _
      $region12: #{tpu_custom_call.1} parent=5 // pred_fallthru
        _
      %p165 = scmp.lt.s32.totalorder %s18, 2
      // Predicated region
      $region17: #{tpu_custom_call.1} parent=5 // pred_check
        %p166 = pneg %p165
      $region18: #{tpu_custom_call.1} parent=5 // pred_check_branch
        %168 = sbr.rel (%p166) target = $region20
      $region19: #{tpu_custom_call.1} parent=5 // pred_region
        // Predicated region
        $region21: #{tpu_custom_call.1} parent=19 // pred_check
          %p169 = pneg %p52
        $region22: #{tpu_custom_call.1} parent=19 // pred_check_branch
          %171 = sbr.rel (%p169) target = $region24
        $region23: #{tpu_custom_call.1} parent=19 // pred_region
          %s172 = sand.u32 %s42, 1
          %s173 = scalar_lea.sflag [#allocation5], %s172
          %s174 = sand.u32 %s42, 1
          %s175 = smul.addr %s174, 16
          %s176 = scalar_lea.vmem [#allocation4], %s175
          %s177 = smul.u32 2, %s26
          %s179 = ssub.s32 256, 256
          %180 = vsyncadd %s173, %s179
          %s181 = smul.addr %s25, 4
          %s182 = sadd.s32 %s177, %s181
          %s183 = smul.addr %s182, 128
          %s184 = scalar_lea.hbm %s0, %s183
          %s185 = sshll.u32 %s176, 4
          %s186 = int_to_ptr.vmem [resolvable:$true] %s185
          %191 = dma.hbm_to_vmem [thread:$0]  %s184, 256, %s186, %s173, 128, 128, 8
        $region24: #{tpu_custom_call.1} parent=19 // pred_fallthru
          _
        // Predicated region
        $region25: #{tpu_custom_call.1} parent=19 // pred_check
          %p192 = pneg %p82
        $region26: #{tpu_custom_call.1} parent=19 // pred_check_branch
          %194 = sbr.rel (%p192) target = $region28
        $region27: #{tpu_custom_call.1} parent=19 // pred_region
          %s195 = sand.u32 %s18, 1
          %s196 = scalar_lea.sflag [#allocation8], %s195
          %s197 = sand.u32 %s72, 1
          %s198 = smul.addr %s197, 16
          %s199 = scalar_lea.vmem [#allocation7], %s198
          %s200 = sadd.s32 %s26, 1
          %s201 = smul.u32 2, %s200
          %s203 = ssub.s32 256, 256
          %204 = vsyncadd %s196, %s203
          %s205 = smul.addr %s25, 4
          %s206 = sadd.s32 %s201, %s205
          %s207 = smul.addr %s206, 128
          %s208 = scalar_lea.hbm %s1, %s207
          %s209 = sshll.u32 %s199, 4
          %s210 = int_to_ptr.vmem [resolvable:$true] %s209
          %215 = dma.hbm_to_vmem [thread:$0]  %s208, 256, %s210, %s196, 128, 128, 8
        $region28: #{tpu_custom_call.1} parent=19 // pred_fallthru
          _
      $region20: #{tpu_custom_call.1} parent=5 // pred_fallthru
        _
      %p216 = scmp.le.s32.totalorder 1, %s18
      %p217 = scmp.lt.s32.totalorder %s18, 3
      %p218 = pnand %p216, %p217
      %p219 = pneg %p218
      // Predicated region
      $region29: #{tpu_custom_call.1} parent=5 // pred_check
        _
      $region30: #{tpu_custom_call.1} parent=5 // pred_check_branch
        %221 = sbr.rel (%p218) target = $region32
      $region31: #{tpu_custom_call.1} parent=5 // pred_region
        %s222 = ssub.s32 %s18, 1
        %s223 = sand.u32 %s45, 1
        %s224 = scalar_lea.sflag [#allocation5], %s223
        %s225 = sand.u32 %s45, 1
        %s226 = smul.addr %s225, 16
        %s227 = scalar_lea.vmem [#allocation4], %s226
        // Predicated region
        $region33: #{tpu_custom_call.1} parent=31 // pred_check
          %p228 = pneg %p58
        $region34: #{tpu_custom_call.1} parent=31 // pred_check_branch
          %230 = sbr.rel (%p228) target = $region36
        $region35: #{tpu_custom_call.1} parent=31 // pred_region
          %231 = dma.done %s224, 256
        $region36: #{tpu_custom_call.1} parent=31 // pred_fallthru
          _
        %s232 = sand.u32 %s23, 1
        %s233 = scalar_lea.sflag [#allocation8], %s232
        %s234 = sand.u32 %s75, 1
        %s235 = smul.addr %s234, 16
        %s236 = scalar_lea.vmem [#allocation7], %s235
        // Predicated region
        $region37: #{tpu_custom_call.1} parent=31 // pred_check
          %p237 = pneg %p88
        $region38: #{tpu_custom_call.1} parent=31 // pred_check_branch
          %239 = sbr.rel (%p237) target = $region40
        $region39: #{tpu_custom_call.1} parent=31 // pred_region
          %240 = dma.done %s233, 256
        $region40: #{tpu_custom_call.1} parent=31 // pred_fallthru
          _
        // Predicated region
        $region41: #{tpu_custom_call.1} parent=31 // pred_check
          %p241 = pneg %p109
        $region42: #{tpu_custom_call.1} parent=31 // pred_check_branch
          %243 = sbr.rel (%p241) target = $region44
        $region43: #{tpu_custom_call.1} parent=31 // pred_region
          %244 = dma.done [#allocation8], 6144
        $region44: #{tpu_custom_call.1} parent=31 // pred_fallthru
          _
        %s245 = sand.u32 %s45, 1
        %s246 = scalar_lea.sflag [#allocation5], %s245
        %s247 = sand.u32 %s45, 1
        %s248 = smul.addr %s247, 16
        %s249 = scalar_lea.vmem [#allocation4], %s248
        %p250 = pneg %p58
        %p251 = pneg %p55
        %s252 = sand.u32 %s23, 1
        %s253 = scalar_lea.sflag [#allocation8], %s252
        %s254 = sand.u32 %s75, 1
        %s255 = smul.addr %s254, 16
        %s256 = scalar_lea.vmem [#allocation7], %s255
        %p257 = pneg %p88
        %p258 = pneg %p85
        %p259 = pneg %p109
        %p260 = pneg %p106
        %p261 = pneg %p137
        %p262 = pneg %p134
        %s263 = sand.u32 %s124, 1
        %s264 = scalar_lea.sflag [#allocation6], %s263
        %s265 = sand.u32 %s124, 1
        %s266 = smul.addr %s265, 16
        %s267 = scalar_lea.vmem [#allocation10], %s266
        %s268 = smul.u32 2, %s28
        %s269 = sadd.s32 %s28, 1
        %s270 = smul.u32 2, %s269
        %s271 = smul.u32 2, %s28
        %v272 = vld [vmem:[%s227] sm:$0xff]
        %v273 = vld [vmem:[%s227 + $0x8] sm:$0xff]
        %274 = vst [vmem:[#allocation2] sm:$0xff] %v272
        %275 = vst [vmem:[#allocation2 + $0x8] sm:$0xff] %v273
        %v276 = vld [vmem:[%s236] sm:$0xff]
        %v277 = vld [vmem:[%s236 + $0x8] sm:$0xff]
        %278 = vst [vmem:[#allocation2 + $0x10] sm:$0xff] %v276
        %279 = vst [vmem:[#allocation2 + $0x18] sm:$0xff] %v277
        %v280 = vld [vmem:[#allocation2] sm:$0xff]
        %v281 = vld [vmem:[#allocation2 + $0x8] sm:$0xff]
        %v282 = vld [vmem:[#allocation9] sm:$0xff]
        %v283 = vld [vmem:[#allocation9 + $0x8] sm:$0xff]
        %v284 = vld [vmem:[#allocation9 + $0x10] sm:$0xff]
        %v285 = vld [vmem:[#allocation9 + $0x18] sm:$0xff]
        %v286 = vld [vmem:[#allocation9 + $0x20] sm:$0xff]
        %v287 = vld [vmem:[#allocation9 + $0x28] sm:$0xff]
        %v288 = vld [vmem:[#allocation9 + $0x30] sm:$0xff]
        %v289 = vld [vmem:[#allocation9 + $0x38] sm:$0xff]
        %v290 = vld [vmem:[#allocation9 + $0x40] sm:$0xff]
        %v291 = vld [vmem:[#allocation9 + $0x48] sm:$0xff]
        %v292 = vld [vmem:[#allocation9 + $0x50] sm:$0xff]
        %v293 = vld [vmem:[#allocation9 + $0x58] sm:$0xff]
        %v294 = vld [vmem:[#allocation9 + $0x60] sm:$0xff]
        %v295 = vld [vmem:[#allocation9 + $0x68] sm:$0xff]
        %v296 = vld [vmem:[#allocation9 + $0x70] sm:$0xff]
        %v297 = vld [vmem:[#allocation9 + $0x78] sm:$0xff]
        %298 = vmatprep.subr.mxu0 0.0
        %299 = vmatpush1.msra.mxu0 %v282
        %300 = vmatprep.subr.mxu0 0.0
        %301 = vmatpush1.msra.mxu0 %v283
        %302 = vmatprep.subr.mxu0 0.0
        %303 = vmatpush1.msra.mxu0 %v284
        %304 = vmatprep.subr.mxu0 0.0
        %305 = vmatpush1.msra.mxu0 %v285
        %306 = vmatprep.subr.mxu0 0.0
        %307 = vmatpush1.msra.mxu0 %v286
        %308 = vmatprep.subr.mxu0 0.0
        %309 = vmatpush1.msra.mxu0 %v287
        %310 = vmatprep.subr.mxu0 0.0
        %311 = vmatpush1.msra.mxu0 %v288
        %312 = vmatprep.subr.mxu0 0.0
        %313 = vmatpush1.msra.mxu0 %v289
        %314 = vmatprep.subr.mxu0 0.0
        %315 = vmatpush1.msra.mxu0 %v290
        %316 = vmatprep.subr.mxu0 0.0
        %317 = vmatpush1.msra.mxu0 %v291
        %318 = vmatprep.subr.mxu0 0.0
        %319 = vmatpush1.msra.mxu0 %v292
        %320 = vmatprep.subr.mxu0 0.0
        %321 = vmatpush1.msra.mxu0 %v293
        %322 = vmatprep.subr.mxu0 0.0
        %323 = vmatpush1.msra.mxu0 %v294
        %324 = vmatprep.subr.mxu0 0.0
        %325 = vmatpush1.msra.mxu0 %v295
        %326 = vmatprep.subr.mxu0 0.0
        %327 = vmatpush1.msra.mxu0 %v296
        %328 = vmatprep.subr.mxu0 0.0
        %329 = vmatpush1.msra.mxu0 %v297
        %330 = vmatprep.subr.mxu0 0.0
        %331 = vmatpush1.msra.mxu0 0.0
        %332 = vmatprep.subr.mxu0 0.0
        %333 = vmatpush1.msra.mxu0 0.0
        %334 = vmatprep.subr.mxu0 0.0
        %335 = vmatpush1.msra.mxu0 0.0
        %336 = vmatprep.subr.mxu0 0.0
        %337 = vmatpush1.msra.mxu0 0.0
        %338 = vmatprep.subr.mxu0 0.0
        %339 = vmatpush1.msra.mxu0 0.0
        %340 = vmatprep.subr.mxu0 0.0
        %341 = vmatpush1.msra.mxu0 0.0
        %342 = vmatprep.subr.mxu0 0.0
        %343 = vmatpush1.msra.mxu0 0.0
        %344 = vmatprep.subr.mxu0 0.0
        %345 = vmatpush1.msra.mxu0 0.0
        %346 = vmatprep.subr.mxu0 0.0
        %347 = vmatpush1.msra.mxu0 0.0
        %348 = vmatprep.subr.mxu0 0.0
        %349 = vmatpush1.msra.mxu0 0.0
        %350 = vmatprep.subr.mxu0 0.0
        %351 = vmatpush1.msra.mxu0 0.0
        %352 = vmatprep.subr.mxu0 0.0
        %353 = vmatpush1.msra.mxu0 0.0
        %354 = vmatprep.subr.mxu0 0.0
        %355 = vmatpush1.msra.mxu0 0.0
        %356 = vmatprep.subr.mxu0 0.0
        %357 = vmatpush1.msra.mxu0 0.0
        %358 = vmatprep.subr.mxu0 0.0
        %359 = vmatpush1.msra.mxu0 0.0
        %360 = vmatprep.subr.mxu0 0.0
        %361 = vmatpush1.msra.mxu0 0.0
        %362 = vmatprep.mubr.f32.mxu0 0.0
        %363 = vmatmul.mubr.f32.gmra.mrb[0].mxu0 %v280
        %v364 = vpop.f32.mrb[0].mxu0
        %v365 = vadd.f32 0.0, %v364
        %v366 = vpop.f32.mrb[0].mxu0
        %367 = vmatprep.mubr.f32.mxu0 0.0
        %368 = vmatmul.mubr.f32.gmra.mrb[0].mxu0 %v281
        %v369 = vpop.f32.mrb[0].mxu0
        %v370 = vadd.f32 0.0, %v369
        %v371 = vpop.f32.mrb[0].mxu0
        %372 = vdwg.mxu0
        %373 = vst [vmem:[#allocation3] sm:$0xff] %v365
        %374 = vst [vmem:[#allocation3 + $0x8] sm:$0xff] %v370
        %v375 = vld [vmem:[#allocation3] sm:$0xff]
        %v376 = vld [vmem:[#allocation3 + $0x8] sm:$0xff]
        %v377 = vld [vmem:[#allocation2 + $0x1] sm:$0xff]
        %v378 = vld [vmem:[#allocation2 + $0x9] sm:$0xff]
        %s379 = scalar_lea.vmem [#allocation9], 128
        %v380 = vld [vmem:[%s379] sm:$0xff]
        %v381 = vld [vmem:[%s379 + $0x8] sm:$0xff]
        %v382 = vld [vmem:[%s379 + $0x10] sm:$0xff]
        %v383 = vld [vmem:[%s379 + $0x18] sm:$0xff]
        %v384 = vld [vmem:[%s379 + $0x20] sm:$0xff]
        %v385 = vld [vmem:[%s379 + $0x28] sm:$0xff]
        %v386 = vld [vmem:[%s379 + $0x30] sm:$0xff]
        %v387 = vld [vmem:[%s379 + $0x38] sm:$0xff]
        %v388 = vld [vmem:[%s379 + $0x40] sm:$0xff]
        %v389 = vld [vmem:[%s379 + $0x48] sm:$0xff]
        %v390 = vld [vmem:[%s379 + $0x50] sm:$0xff]
        %v391 = vld [vmem:[%s379 + $0x58] sm:$0xff]
        %v392 = vld [vmem:[%s379 + $0x60] sm:$0xff]
        %v393 = vld [vmem:[%s379 + $0x68] sm:$0xff]
        %v394 = vld [vmem:[%s379 + $0x70] sm:$0xff]
        %v395 = vld [vmem:[%s379 + $0x78] sm:$0xff]
        %396 = vmatprep.subr.mxu0 0.0
        %397 = vmatpush1.msra.mxu0 %v380
        %398 = vmatprep.subr.mxu0 0.0
        %399 = vmatpush1.msra.mxu0 %v381
        %400 = vmatprep.subr.mxu0 0.0
        %401 = vmatpush1.msra.mxu0 %v382
        %402 = vmatprep.subr.mxu0 0.0
        %403 = vmatpush1.msra.mxu0 %v383
        %404 = vmatprep.subr.mxu0 0.0
        %405 = vmatpush1.msra.mxu0 %v384
        %406 = vmatprep.subr.mxu0 0.0
        %407 = vmatpush1.msra.mxu0 %v385
        %408 = vmatprep.subr.mxu0 0.0
        %409 = vmatpush1.msra.mxu0 %v386
        %410 = vmatprep.subr.mxu0 0.0
        %411 = vmatpush1.msra.mxu0 %v387
        %412 = vmatprep.subr.mxu0 0.0
        %413 = vmatpush1.msra.mxu0 %v388
        %414 = vmatprep.subr.mxu0 0.0
        %415 = vmatpush1.msra.mxu0 %v389
        %416 = vmatprep.subr.mxu0 0.0
        %417 = vmatpush1.msra.mxu0 %v390
        %418 = vmatprep.subr.mxu0 0.0
        %419 = vmatpush1.msra.mxu0 %v391
        %420 = vmatprep.subr.mxu0 0.0
        %421 = vmatpush1.msra.mxu0 %v392
        %422 = vmatprep.subr.mxu0 0.0
        %423 = vmatpush1.msra.mxu0 %v393
        %424 = vmatprep.subr.mxu0 0.0
        %425 = vmatpush1.msra.mxu0 %v394
        %426 = vmatprep.subr.mxu0 0.0
        %427 = vmatpush1.msra.mxu0 %v395
        %428 = vmatprep.subr.mxu0 0.0
        %429 = vmatpush1.msra.mxu0 0.0
        %430 = vmatprep.subr.mxu0 0.0
        %431 = vmatpush1.msra.mxu0 0.0
        %432 = vmatprep.subr.mxu0 0.0
        %433 = vmatpush1.msra.mxu0 0.0
        %434 = vmatprep.subr.mxu0 0.0
        %435 = vmatpush1.msra.mxu0 0.0
        %436 = vmatprep.subr.mxu0 0.0
        %437 = vmatpush1.msra.mxu0 0.0
        %438 = vmatprep.subr.mxu0 0.0
        %439 = vmatpush1.msra.mxu0 0.0
        %440 = vmatprep.subr.mxu0 0.0
        %441 = vmatpush1.msra.mxu0 0.0
        %442 = vmatprep.subr.mxu0 0.0
        %443 = vmatpush1.msra.mxu0 0.0
        %444 = vmatprep.subr.mxu0 0.0
        %445 = vmatpush1.msra.mxu0 0.0
        %446 = vmatprep.subr.mxu0 0.0
        %447 = vmatpush1.msra.mxu0 0.0
        %448 = vmatprep.subr.mxu0 0.0
        %449 = vmatpush1.msra.mxu0 0.0
        %450 = vmatprep.subr.mxu0 0.0
        %451 = vmatpush1.msra.mxu0 0.0
        %452 = vmatprep.subr.mxu0 0.0
        %453 = vmatpush1.msra.mxu0 0.0
        %454 = vmatprep.subr.mxu0 0.0
        %455 = vmatpush1.msra.mxu0 0.0
        %456 = vmatprep.subr.mxu0 0.0
        %457 = vmatpush1.msra.mxu0 0.0
        %458 = vmatprep.subr.mxu0 0.0
        %459 = vmatpush1.msra.mxu0 0.0
        %460 = vmatprep.mubr.f32.mxu0 0.0
        %461 = vmatmul.mubr.f32.gmra.mrb[0].mxu0 %v377
        %v462 = vpop.f32.mrb[0].mxu0
        %v463 = vadd.f32 0.0, %v462
        %v464 = vpop.f32.mrb[0].mxu0
        %465 = vmatprep.mubr.f32.mxu0 0.0
        %466 = vmatmul.mubr.f32.gmra.mrb[0].mxu0 %v378
        %v467 = vpop.f32.mrb[0].mxu0
        %v468 = vadd.f32 0.0, %v467
        %v469 = vpop.f32.mrb[0].mxu0
        %470 = vdwg.mxu0
        %v471 = vadd.f32 %v375, %v463
        %v472 = vadd.f32 %v376, %v468
        %473 = vst [vmem:[#allocation3] sm:$0xff] %v471
        %474 = vst [vmem:[#allocation3 + $0x8] sm:$0xff] %v472
        %v475 = vld [vmem:[#allocation3] sm:$0xff]
        %v476 = vld [vmem:[#allocation3 + $0x8] sm:$0xff]
        %v477 = vld [vmem:[#allocation2 + $0x2] sm:$0xff]
        %v478 = vld [vmem:[#allocation2 + $0xa] sm:$0xff]
        %s479 = scalar_lea.vmem [#allocation9], 256
        %v480 = vld [vmem:[%s479] sm:$0xff]
        %v481 = vld [vmem:[%s479 + $0x8] sm:$0xff]
        %v482 = vld [vmem:[%s479 + $0x10] sm:$0xff]
        %v483 = vld [vmem:[%s479 + $0x18] sm:$0xff]
        %v484 = vld [vmem:[%s479 + $0x20] sm:$0xff]
        %v485 = vld [vmem:[%s479 + $0x28] sm:$0xff]
        %v486 = vld [vmem:[%s479 + $0x30] sm:$0xff]
        %v487 = vld [vmem:[%s479 + $0x38] sm:$0xff]
        %v488 = vld [vmem:[%s479 + $0x40] sm:$0xff]
        %v489 = vld [vmem:[%s479 + $0x48] sm:$0xff]
        %v490 = vld [vmem:[%s479 + $0x50] sm:$0xff]
        %v491 = vld [vmem:[%s479 + $0x58] sm:$0xff]
        %v492 = vld [vmem:[%s479 + $0x60] sm:$0xff]
        %v493 = vld [vmem:[%s479 + $0x68] sm:$0xff]
        %v494 = vld [vmem:[%s479 + $0x70] sm:$0xff]
        %v495 = vld [vmem:[%s479 + $0x78] sm:$0xff]
        %496 = vmatprep.subr.mxu0 0.0
        %497 = vmatpush1.msra.mxu0 %v480
        %498 = vmatprep.subr.mxu0 0.0
        %499 = vmatpush1.msra.mxu0 %v481
        %500 = vmatprep.subr.mxu0 0.0
        %501 = vmatpush1.msra.mxu0 %v482
        %502 = vmatprep.subr.mxu0 0.0
        %503 = vmatpush1.msra.mxu0 %v483
        %504 = vmatprep.subr.mxu0 0.0
        %505 = vmatpush1.msra.mxu0 %v484
        %506 = vmatprep.subr.mxu0 0.0
        %507 = vmatpush1.msra.mxu0 %v485
        %508 = vmatprep.subr.mxu0 0.0
        %509 = vmatpush1.msra.mxu0 %v486
        %510 = vmatprep.subr.mxu0 0.0
        %511 = vmatpush1.msra.mxu0 %v487
        %512 = vmatprep.subr.mxu0 0.0
        %513 = vmatpush1.msra.mxu0 %v488
        %514 = vmatprep.subr.mxu0 0.0
        %515 = vmatpush1.msra.mxu0 %v489
        %516 = vmatprep.subr.mxu0 0.0
        %517 = vmatpush1.msra.mxu0 %v490
        %518 = vmatprep.subr.mxu0 0.0
        %519 = vmatpush1.msra.mxu0 %v491
        %520 = vmatprep.subr.mxu0 0.0
        %521 = vmatpush1.msra.mxu0 %v492
        %522 = vmatprep.subr.mxu0 0.0
        %523 = vmatpush1.msra.mxu0 %v493
        %524 = vmatprep.subr.mxu0 0.0
        %525 = vmatpush1.msra.mxu0 %v494
        %526 = vmatprep.subr.mxu0 0.0
        %527 = vmatpush1.msra.mxu0 %v495
        %528 = vmatprep.subr.mxu0 0.0
        %529 = vmatpush1.msra.mxu0 0.0
        %530 = vmatprep.subr.mxu0 0.0
        %531 = vmatpush1.msra.mxu0 0.0
        %532 = vmatprep.subr.mxu0 0.0
        %533 = vmatpush1.msra.mxu0 0.0
        %534 = vmatprep.subr.mxu0 0.0
        %535 = vmatpush1.msra.mxu0 0.0
        %536 = vmatprep.subr.mxu0 0.0
        %537 = vmatpush1.msra.mxu0 0.0
        %538 = vmatprep.subr.mxu0 0.0
        %539 = vmatpush1.msra.mxu0 0.0
        %540 = vmatprep.subr.mxu0 0.0
        %541 = vmatpush1.msra.mxu0 0.0
        %542 = vmatprep.subr.mxu0 0.0
        %543 = vmatpush1.msra.mxu0 0.0
        %544 = vmatprep.subr.mxu0 0.0
        %545 = vmatpush1.msra.mxu0 0.0
        %546 = vmatprep.subr.mxu0 0.0
        %547 = vmatpush1.msra.mxu0 0.0
        %548 = vmatprep.subr.mxu0 0.0
        %549 = vmatpush1.msra.mxu0 0.0
        %550 = vmatprep.subr.mxu0 0.0
        %551 = vmatpush1.msra.mxu0 0.0
        %552 = vmatprep.subr.mxu0 0.0
        %553 = vmatpush1.msra.mxu0 0.0
        %554 = vmatprep.subr.mxu0 0.0
        %555 = vmatpush1.msra.mxu0 0.0
        %556 = vmatprep.subr.mxu0 0.0
        %557 = vmatpush1.msra.mxu0 0.0
        %558 = vmatprep.subr.mxu0 0.0
        %559 = vmatpush1.msra.mxu0 0.0
        %560 = vmatprep.mubr.f32.mxu0 0.0
        %561 = vmatmul.mubr.f32.gmra.mrb[0].mxu0 %v477
        %v562 = vpop.f32.mrb[0].mxu0
        %v563 = vadd.f32 0.0, %v562
        %v564 = vpop.f32.mrb[0].mxu0
        %565 = vmatprep.mubr.f32.mxu0 0.0
        %566 = vmatmul.mubr.f32.gmra.mrb[0].mxu0 %v478
        %v567 = vpop.f32.mrb[0].mxu0
        %v568 = vadd.f32 0.0, %v567
        %v569 = vpop.f32.mrb[0].mxu0
        %570 = vdwg.mxu0
        %v571 = vadd.f32 %v475, %v563
        %v572 = vadd.f32 %v476, %v568
        %573 = vst [vmem:[%s267] sm:$0xff] %v571
        %574 = vst [vmem:[%s267 + $0x8] sm:$0xff] %v572
        %s575 = sand.u32 %s124, 1
        %s576 = scalar_lea.sflag [#allocation6], %s575
        %s577 = sand.u32 %s124, 1
        %s578 = smul.addr %s577, 16
        %s579 = scalar_lea.vmem [#allocation10], %s578
        // Predicated region
        $region45: #{tpu_custom_call.1} parent=31 // pred_check
          %p580 = pneg %p134
        $region46: #{tpu_custom_call.1} parent=31 // pred_check_branch
          %582 = sbr.rel (%p580) target = $region48
        $region47: #{tpu_custom_call.1} parent=31 // pred_region
          %s583 = smul.u32 2, %s28
          %s585 = ssub.s32 256, 256
          %586 = vsyncadd %s576, %s585
          %s587 = smul.addr %s27, 2
          %s588 = sadd.s32 %s583, %s587
          %s589 = smul.addr %s588, 128
          %s590 = scalar_lea.hbm %s3, %s589
          %s591 = sshll.u32 %s579, 4
          %s592 = int_to_ptr.vmem [resolvable:$true] %s591
          %597 = dma.vmem_to_hbm [thread:$0]  %s592, 256, %s590, %s576, 128, 128, 8
        $region48: #{tpu_custom_call.1} parent=31 // pred_fallthru
          _
      $region32: #{tpu_custom_call.1} parent=5 // pred_fallthru
        _
      %p598 = scmp.le.s32.totalorder 2, %s18
      // Predicated region
      $region49: #{tpu_custom_call.1} parent=5 // pred_check
        %p599 = pneg %p598
      $region50: #{tpu_custom_call.1} parent=5 // pred_check_branch
        %601 = sbr.rel (%p599) target = $region52
      $region51: #{tpu_custom_call.1} parent=5 // pred_region
        %s602 = ssub.s32 %s18, 2
        // Predicated region
        $region53: #{tpu_custom_call.1} parent=51 // pred_check
          %p603 = pneg %p140
        $region54: #{tpu_custom_call.1} parent=51 // pred_check_branch
          %605 = sbr.rel (%p603) target = $region56
        $region55: #{tpu_custom_call.1} parent=51 // pred_region
          %s606 = sand.u32 %s125, 1
          %s607 = scalar_lea.sflag [#allocation6], %s606
          %s608 = sand.u32 %s125, 1
          %s609 = smul.addr %s608, 16
          %s610 = scalar_lea.vmem [#allocation10], %s609
          %611 = dma.done %s607, 256
        $region56: #{tpu_custom_call.1} parent=51 // pred_fallthru
          _
      $region52: #{tpu_custom_call.1} parent=5 // pred_fallthru
        _
    $region6: #{tpu_custom_call.1} parent=1 // loop_footer
      %s22 = sadd.s32 1, %s18
    $region7: #{tpu_custom_call.1} parent=1 // loop_footer_branch
      %17 = sbr.rel target = $region3
    $region8: #{tpu_custom_call.1} parent=1 // loop_exit
      _
    %612 = vsyncpa [#allocation5], 1
    %s613 = scalar_lea.sflag [#allocation5], 1
    %614 = vsyncpa %s613, 1
    %615 = vsyncpa [#allocation8], 1
    %s616 = scalar_lea.sflag [#allocation8], 1
    %617 = vsyncpa %s616, 1
    %618 = vsyncpa [#allocation6], 1
    %s619 = scalar_lea.sflag [#allocation6], 1
    %620 = vsyncpa %s619, 1

</llo_original>
